<compile_context>
chip_gen: v7x
topology: tpu7x:2x2x1
jax: 0.10.0
libtpu: 0.0.40
codegen_flags: <defaults>
</compile_context>

<pallas_src>
import jax
import jax.numpy as jnp
import numpy as np
from jax.experimental import pallas as pl
from jax.experimental.pallas import tpu as pltpu

N = 1              # batch (cat + broadcast in the original module only works for N == 1)
C = 5              # in/out channels of both convs
H = W = 16         # spatial size
HW = H * W         # 256 -> lane dimension
KH = KW = 3
TAPS = KH * KW     # 9
PADDED = (H + 2) * W + 2   # row-zero-padded image, flattened, +1 zero at each end


def _fused_kernel(x_ref, w_ref, b_ref, noise_ref, other_ref,
                  out_ref, xpad_ref, patch_ref):
    """
    x_ref     : (C, HW)      f32  input image (channels on sublanes, HW on lanes)
    w_ref     : (2C, 9C)     f32  [conv1; conv2] weights, columns ordered (tap, ci)
    b_ref     : (2C, 1)      f32  [b1; b2]
    noise_ref : (C, HW)      f32  the "padding1 = randn_like(v1)" tensor
    other_ref : (1,)         f32  SMEM scalar `other`
    out_ref   : (2, C, HW)   f32  out[0] = v3 + v2,  out[1] = noise + v2
    xpad_ref  : (C, PADDED)  f32  scratch: row-zero-padded, flattened image
    patch_ref : (9C, HW)     f32  scratch: im2col patch matrix
    """
    # ---- fused zero padding: zero rows above/below the image + 1 zero at each end.
    xpad_ref[...] = jnp.zeros_like(xpad_ref)
    xpad_ref[:, W + 1:W + 1 + HW] = x_ref[...]   # pixel p lands at flat index W+1+p

    # column index of every output position (to mask the dx wrap across rows)
    col = jax.lax.broadcasted_iota(jnp.int32, (C, HW), 1) % W

    # ---- im2col: 9 static lane-offset taps of the padded image -----------------
    for kh in range(KH):                 # dy = kh - 1
        for kw in range(KW):             # dx = kw - 1
            dy, dx = kh - 1, kw - 1
            start = 1 + (dy + 1) * W + dx              # flat offset of this tap
            tap = xpad_ref[:, start:start + HW]        # (C, HW), static lane slice
            valid = (col + dx >= 0) & (col + dx < W)   # dy handled by zero rows
            t = kh * KW + kw
            patch_ref[t * C:(t + 1) * C, :] = jnp.where(valid, tap, 0.0)

    # ---- both convs as a single MXU matmul -------------------------------------
    res = jnp.dot(w_ref[...], patch_ref[...],
                  preferred_element_type=jnp.float32)   # (2C, HW)
    res = res + b_ref[...]                              # per-channel bias (broadcast over lanes)
    v1 = res[:C, :]
    v2 = res[C:, :]

    other = other_ref[0]
    out_ref[0] = v1 + other + v2        # first half of torch.cat  (v3 + v2)
    out_ref[1] = noise_ref[...] + v2    # second half              (noise + v2)


@jax.jit
def fused_forward(x_nchw, w1, b1, w2, b2, noise_nchw, other):
    """x: (1, C, H, W); w*: (C, C, KH, KW); b*: (C,). Returns (2, C, H, W)."""
    assert x_nchw.shape == (N, C, H, W), "cat+broadcast semantics require batch == 1"
    # NCHW with batch 1 is already contiguous as (C, H*W): free reshapes only.
    x2d = x_nchw.reshape(C, HW).astype(jnp.float32)
    noise2d = noise_nchw.reshape(C, HW).astype(jnp.float32)

    # Tiny one-time parameter prep (a few hundred bytes):
    # (Cout, Cin, KH, KW) -> (Cout, KH, KW, Cin) -> (Cout, 9*Cin), then stack convs.
    w1m = jnp.transpose(w1, (0, 2, 3, 1)).reshape(C, TAPS * C)
    w2m = jnp.transpose(w2, (0, 2, 3, 1)).reshape(C, TAPS * C)
    w_all = jnp.concatenate([w1m, w2m], axis=0).astype(jnp.float32)     # (2C, 9C)
    b_all = jnp.concatenate([b1, b2]).reshape(2 * C, 1).astype(jnp.float32)
    other_arr = jnp.asarray(other, jnp.float32).reshape(1)

    out = pl.pallas_call(
        _fused_kernel,
        out_shape=jax.ShapeDtypeStruct((2, C, HW), jnp.float32),
        in_specs=[
            pl.BlockSpec(memory_space=pltpu.MemorySpace.VMEM),   # x
            pl.BlockSpec(memory_space=pltpu.MemorySpace.VMEM),   # w_all
            pl.BlockSpec(memory_space=pltpu.MemorySpace.VMEM),   # b_all
            pl.BlockSpec(memory_space=pltpu.MemorySpace.VMEM),   # noise
            pl.BlockSpec(memory_space=pltpu.MemorySpace.SMEM),   # other (scalar)
        ],
        out_specs=pl.BlockSpec(memory_space=pltpu.MemorySpace.VMEM),
        scratch_shapes=[
            pltpu.VMEM((C, PADDED), jnp.float32),
            pltpu.VMEM((TAPS * C, HW), jnp.float32),
        ],
    )(x2d, w_all, b_all, noise2d, other_arr)

    # (2, C, HW) -> (2N, C, H, W): free reshape (NCHW-flat is contiguous).
    return out.reshape(2 * N, C, H, W)


def _reference_forward(x, w1, b1, w2, b2, noise, other):
    """Pure-JAX reference mirroring the PyTorch module (N == 1)."""
    dn = jax.lax.conv_dimension_numbers(x.shape, w1.shape, ('NCHW', 'OIHW', 'NCHW'))
    v1 = jax.lax.conv_general_dilated(x, w1, (1, 1), ((1, 1), (1, 1)),
                                      dimension_numbers=dn) + b1[None, :, None, None]
    v2 = jax.lax.conv_general_dilated(x, w2, (1, 1), ((1, 1), (1, 1)),
                                      dimension_numbers=dn) + b2[None, :, None, None]
    v3 = v1 + other
    return jnp.concatenate([v3, noise], axis=0) + v2


if __name__ == "__main__":
    key = jax.random.PRNGKey(0)
    kx, kw1, kb1, kw2, kb2, kn = jax.random.split(key, 6)

    # Deterministic synthetic parameters (Conv2d(5, 5, 3) shapes / init bounds).
    fan_in = C * KH * KW
    bound = 1.0 / np.sqrt(fan_in)
    w1 = jax.random.uniform(kw1, (C, C, KH, KW), jnp.float32, -bound, bound)
    b1 = jax.random.uniform(kb1, (C,), jnp.float32, -bound, bound)
    w2 = jax.random.uniform(kw2, (C, C, KH, KW), jnp.float32, -bound, bound)
    b2 = jax.random.uniform(kb2, (C,), jnp.float32, -bound, bound)

    x = jax.random.normal(kx, (N, C, H, W), jnp.float32)
    # TODO(synk): torch.randn_like draws fresh randomness every call; here the
    # noise is a deterministic kernel input generated once from PRNGKey(0).
    noise = jax.random.normal(kn, (N, C, H, W), jnp.float32)
    other = 3.0

    out = fused_forward(x, w1, b1, w2, b2, noise, other)
    out = jax.block_until_ready(out)

    ref = _reference_forward(x, w1, b1, w2, b2, noise, other)
    assert out.shape == (2 * N, C, H, W)
    np.testing.assert_allclose(np.asarray(out), np.asarray(ref),
                               rtol=1e-3, atol=1e-3)
    print("KERNEL_OK")
</pallas_src>

<mosaic_0001>
module attributes {stable_mosaic.version = 11 : i64} {
  func.func @_fused_kernel(%arg0: memref<5x256xf32, #tpu.memory_space<vmem>>, %arg1: memref<10x45xf32, #tpu.memory_space<vmem>>, %arg2: memref<10x1xf32, #tpu.memory_space<vmem>>, %arg3: memref<5x256xf32, #tpu.memory_space<vmem>>, %arg4: memref<1xf32, #tpu.memory_space<smem>>, %arg5: memref<2x5x256xf32, #tpu.memory_space<vmem>>, %arg6: memref<5x290xf32, #tpu.memory_space<vmem>>, %arg7: memref<45x256xf32, #tpu.memory_space<vmem>>) attributes {dimension_semantics = [], scalar_prefetch = 0 : i64, scratch_operands = 2 : i64, tpu.core_type = #tpu.core_type<tc>} {
    %cst = arith.constant 0.000000e+00 : f32
    %0 = vector.broadcast %cst : f32 to vector<5x290xf32>
    %c0 = arith.constant 0 : index
    %c0_0 = arith.constant 0 : index
    %1 = vector.load %arg6[%c0, %c0_0] : memref<5x290xf32, #tpu.memory_space<vmem>>, vector<5x290xf32>
    tpu.vector_store %arg6[%c0, %c0_0], %0 {strides = array<i32>} : memref<5x290xf32, #tpu.memory_space<vmem>>, vector<5x290xf32>,
    %c0_1 = arith.constant 0 : index
    %c0_2 = arith.constant 0 : index
    %2 = vector.load %arg0[%c0_1, %c0_2] : memref<5x256xf32, #tpu.memory_space<vmem>>, vector<5x256xf32>
    %c0_3 = arith.constant 0 : index
    %c17 = arith.constant 17 : index
    %3 = vector.load %arg6[%c0_3, %c17] : memref<5x290xf32, #tpu.memory_space<vmem>>, vector<5x256xf32>
    tpu.vector_store %arg6[%c0_3, %c17], %2 {strides = array<i32>} : memref<5x290xf32, #tpu.memory_space<vmem>>, vector<5x256xf32>,
    %4 = tpu.iota {dimensions = array<i32: 1>} : vector<5x256xi32>
    %c16_i32 = arith.constant 16 : i32
    %c0_i32 = arith.constant 0 : i32
    %5 = arith.cmpi eq, %c16_i32, %c0_i32 : i32
    %c1_i32 = arith.constant 1 : i32
    %6 = arith.select %5, %c1_i32, %c16_i32 : i32
    %7 = vector.broadcast %6 : i32 to vector<5x256xi32>
    %8 = arith.remsi %4, %7 : vector<5x256xi32>
    %c0_i32_4 = arith.constant 0 : i32
    %9 = vector.broadcast %c0_i32_4 : i32 to vector<5x256xi32>
    %10 = arith.cmpi ne, %8, %9 : vector<5x256xi32>
    %c0_i32_5 = arith.constant 0 : i32
    %11 = vector.broadcast %c0_i32_5 : i32 to vector<5x256xi32>
    %12 = arith.cmpi slt, %8, %11 : vector<5x256xi32>
    %c0_i32_6 = arith.constant 0 : i32
    %13 = arith.cmpi slt, %6, %c0_i32_6 : i32
    %14 = vector.broadcast %13 : i1 to vector<5x256xi1>
    %15 = vector.broadcast %14 : vector<5x256xi1> to vector<5x256xi1>
    %16 = arith.xori %12, %15 : vector<5x256xi1>
    %17 = arith.andi %16, %10 : vector<5x256xi1>
    %18 = vector.broadcast %6 : i32 to vector<5x256xi32>
    %19 = arith.addi %8, %18 : vector<5x256xi32>
    %20 = arith.select %17, %19, %8 : vector<5x256xi1>, vector<5x256xi32>
    %c0_7 = arith.constant 0 : index
    %c0_8 = arith.constant 0 : index
    %21 = vector.load %arg6[%c0_7, %c0_8] : memref<5x290xf32, #tpu.memory_space<vmem>>, vector<5x256xf32>
    %c-1_i32 = arith.constant -1 : i32
    %22 = vector.broadcast %c-1_i32 : i32 to vector<5x256xi32>
    %23 = arith.addi %20, %22 : vector<5x256xi32>
    %c0_i32_9 = arith.constant 0 : i32
    %24 = vector.broadcast %c0_i32_9 : i32 to vector<5x256xi32>
    %25 = arith.cmpi sge, %23, %24 : vector<5x256xi32>
    %c-1_i32_10 = arith.constant -1 : i32
    %26 = vector.broadcast %c-1_i32_10 : i32 to vector<5x256xi32>
    %27 = arith.addi %20, %26 : vector<5x256xi32>
    %c16_i32_11 = arith.constant 16 : i32
    %28 = vector.broadcast %c16_i32_11 : i32 to vector<5x256xi32>
    %29 = arith.cmpi slt, %27, %28 : vector<5x256xi32>
    %30 = arith.andi %25, %29 : vector<5x256xi1>
    %cst_12 = arith.constant 0.000000e+00 : f32
    %31 = vector.broadcast %cst_12 : f32 to vector<5x256xf32>
    %32 = arith.select %30, %21, %31 : vector<5x256xi1>, vector<5x256xf32>
    %c0_13 = arith.constant 0 : index
    %c0_14 = arith.constant 0 : index
    %33 = vector.load %arg7[%c0_13, %c0_14] : memref<45x256xf32, #tpu.memory_space<vmem>>, vector<5x256xf32>
    tpu.vector_store %arg7[%c0_13, %c0_14], %32 {strides = array<i32>} : memref<45x256xf32, #tpu.memory_space<vmem>>, vector<5x256xf32>,
    %c0_15 = arith.constant 0 : index
    %c1 = arith.constant 1 : index
    %34 = vector.load %arg6[%c0_15, %c1] : memref<5x290xf32, #tpu.memory_space<vmem>>, vector<5x256xf32>
    %c0_i32_16 = arith.constant 0 : i32
    %35 = vector.broadcast %c0_i32_16 : i32 to vector<5x256xi32>
    %36 = arith.addi %20, %35 : vector<5x256xi32>
    %c0_i32_17 = arith.constant 0 : i32
    %37 = vector.broadcast %c0_i32_17 : i32 to vector<5x256xi32>
    %38 = arith.cmpi sge, %36, %37 : vector<5x256xi32>
    %c0_i32_18 = arith.constant 0 : i32
    %39 = vector.broadcast %c0_i32_18 : i32 to vector<5x256xi32>
    %40 = arith.addi %20, %39 : vector<5x256xi32>
    %c16_i32_19 = arith.constant 16 : i32
    %41 = vector.broadcast %c16_i32_19 : i32 to vector<5x256xi32>
    %42 = arith.cmpi slt, %40, %41 : vector<5x256xi32>
    %43 = arith.andi %38, %42 : vector<5x256xi1>
    %cst_20 = arith.constant 0.000000e+00 : f32
    %44 = vector.broadcast %cst_20 : f32 to vector<5x256xf32>
    %45 = arith.select %43, %34, %44 : vector<5x256xi1>, vector<5x256xf32>
    %c5 = arith.constant 5 : index
    %c0_21 = arith.constant 0 : index
    %46 = vector.load %arg7[%c5, %c0_21] : memref<45x256xf32, #tpu.memory_space<vmem>>, vector<5x256xf32>
    tpu.vector_store %arg7[%c5, %c0_21], %45 {strides = array<i32>} : memref<45x256xf32, #tpu.memory_space<vmem>>, vector<5x256xf32>,
    %c0_22 = arith.constant 0 : index
    %c2 = arith.constant 2 : index
    %47 = vector.load %arg6[%c0_22, %c2] : memref<5x290xf32, #tpu.memory_space<vmem>>, vector<5x256xf32>
    %c1_i32_23 = arith.constant 1 : i32
    %48 = vector.broadcast %c1_i32_23 : i32 to vector<5x256xi32>
    %49 = arith.addi %20, %48 : vector<5x256xi32>
    %c0_i32_24 = arith.constant 0 : i32
    %50 = vector.broadcast %c0_i32_24 : i32 to vector<5x256xi32>
    %51 = arith.cmpi sge, %49, %50 : vector<5x256xi32>
    %c1_i32_25 = arith.constant 1 : i32
    %52 = vector.broadcast %c1_i32_25 : i32 to vector<5x256xi32>
    %53 = arith.addi %20, %52 : vector<5x256xi32>
    %c16_i32_26 = arith.constant 16 : i32
    %54 = vector.broadcast %c16_i32_26 : i32 to vector<5x256xi32>
    %55 = arith.cmpi slt, %53, %54 : vector<5x256xi32>
    %56 = arith.andi %51, %55 : vector<5x256xi1>
    %cst_27 = arith.constant 0.000000e+00 : f32
    %57 = vector.broadcast %cst_27 : f32 to vector<5x256xf32>
    %58 = arith.select %56, %47, %57 : vector<5x256xi1>, vector<5x256xf32>
    %c10 = arith.constant 10 : index
    %c0_28 = arith.constant 0 : index
    %59 = vector.load %arg7[%c10, %c0_28] : memref<45x256xf32, #tpu.memory_space<vmem>>, vector<5x256xf32>
    tpu.vector_store %arg7[%c10, %c0_28], %58 {strides = array<i32>} : memref<45x256xf32, #tpu.memory_space<vmem>>, vector<5x256xf32>,
    %c0_29 = arith.constant 0 : index
    %c16 = arith.constant 16 : index
    %60 = vector.load %arg6[%c0_29, %c16] : memref<5x290xf32, #tpu.memory_space<vmem>>, vector<5x256xf32>
    %c-1_i32_30 = arith.constant -1 : i32
    %61 = vector.broadcast %c-1_i32_30 : i32 to vector<5x256xi32>
    %62 = arith.addi %20, %61 : vector<5x256xi32>
    %c0_i32_31 = arith.constant 0 : i32
    %63 = vector.broadcast %c0_i32_31 : i32 to vector<5x256xi32>
    %64 = arith.cmpi sge, %62, %63 : vector<5x256xi32>
    %c-1_i32_32 = arith.constant -1 : i32
    %65 = vector.broadcast %c-1_i32_32 : i32 to vector<5x256xi32>
    %66 = arith.addi %20, %65 : vector<5x256xi32>
    %c16_i32_33 = arith.constant 16 : i32
    %67 = vector.broadcast %c16_i32_33 : i32 to vector<5x256xi32>
    %68 = arith.cmpi slt, %66, %67 : vector<5x256xi32>
    %69 = arith.andi %64, %68 : vector<5x256xi1>
    %cst_34 = arith.constant 0.000000e+00 : f32
    %70 = vector.broadcast %cst_34 : f32 to vector<5x256xf32>
    %71 = arith.select %69, %60, %70 : vector<5x256xi1>, vector<5x256xf32>
    %c15 = arith.constant 15 : index
    %c0_35 = arith.constant 0 : index
    %72 = vector.load %arg7[%c15, %c0_35] : memref<45x256xf32, #tpu.memory_space<vmem>>, vector<5x256xf32>
    tpu.vector_store %arg7[%c15, %c0_35], %71 {strides = array<i32>} : memref<45x256xf32, #tpu.memory_space<vmem>>, vector<5x256xf32>,
    %c0_36 = arith.constant 0 : index
    %c17_37 = arith.constant 17 : index
    %73 = vector.load %arg6[%c0_36, %c17_37] : memref<5x290xf32, #tpu.memory_space<vmem>>, vector<5x256xf32>
    %c0_i32_38 = arith.constant 0 : i32
    %74 = vector.broadcast %c0_i32_38 : i32 to vector<5x256xi32>
    %75 = arith.addi %20, %74 : vector<5x256xi32>
    %c0_i32_39 = arith.constant 0 : i32
    %76 = vector.broadcast %c0_i32_39 : i32 to vector<5x256xi32>
    %77 = arith.cmpi sge, %75, %76 : vector<5x256xi32>
    %c0_i32_40 = arith.constant 0 : i32
    %78 = vector.broadcast %c0_i32_40 : i32 to vector<5x256xi32>
    %79 = arith.addi %20, %78 : vector<5x256xi32>
    %c16_i32_41 = arith.constant 16 : i32
    %80 = vector.broadcast %c16_i32_41 : i32 to vector<5x256xi32>
    %81 = arith.cmpi slt, %79, %80 : vector<5x256xi32>
    %82 = arith.andi %77, %81 : vector<5x256xi1>
    %cst_42 = arith.constant 0.000000e+00 : f32
    %83 = vector.broadcast %cst_42 : f32 to vector<5x256xf32>
    %84 = arith.select %82, %73, %83 : vector<5x256xi1>, vector<5x256xf32>
    %c20 = arith.constant 20 : index
    %c0_43 = arith.constant 0 : index
    %85 = vector.load %arg7[%c20, %c0_43] : memref<45x256xf32, #tpu.memory_space<vmem>>, vector<5x256xf32>
    tpu.vector_store %arg7[%c20, %c0_43], %84 {strides = array<i32>} : memref<45x256xf32, #tpu.memory_space<vmem>>, vector<5x256xf32>,
    %c0_44 = arith.constant 0 : index
    %c18 = arith.constant 18 : index
    %86 = vector.load %arg6[%c0_44, %c18] : memref<5x290xf32, #tpu.memory_space<vmem>>, vector<5x256xf32>
    %c1_i32_45 = arith.constant 1 : i32
    %87 = vector.broadcast %c1_i32_45 : i32 to vector<5x256xi32>
    %88 = arith.addi %20, %87 : vector<5x256xi32>
    %c0_i32_46 = arith.constant 0 : i32
    %89 = vector.broadcast %c0_i32_46 : i32 to vector<5x256xi32>
    %90 = arith.cmpi sge, %88, %89 : vector<5x256xi32>
    %c1_i32_47 = arith.constant 1 : i32
    %91 = vector.broadcast %c1_i32_47 : i32 to vector<5x256xi32>
    %92 = arith.addi %20, %91 : vector<5x256xi32>
    %c16_i32_48 = arith.constant 16 : i32
    %93 = vector.broadcast %c16_i32_48 : i32 to vector<5x256xi32>
    %94 = arith.cmpi slt, %92, %93 : vector<5x256xi32>
    %95 = arith.andi %90, %94 : vector<5x256xi1>
    %cst_49 = arith.constant 0.000000e+00 : f32
    %96 = vector.broadcast %cst_49 : f32 to vector<5x256xf32>
    %97 = arith.select %95, %86, %96 : vector<5x256xi1>, vector<5x256xf32>
    %c25 = arith.constant 25 : index
    %c0_50 = arith.constant 0 : index
    %98 = vector.load %arg7[%c25, %c0_50] : memref<45x256xf32, #tpu.memory_space<vmem>>, vector<5x256xf32>
    tpu.vector_store %arg7[%c25, %c0_50], %97 {strides = array<i32>} : memref<45x256xf32, #tpu.memory_space<vmem>>, vector<5x256xf32>,
    %c0_51 = arith.constant 0 : index
    %c32 = arith.constant 32 : index
    %99 = vector.load %arg6[%c0_51, %c32] : memref<5x290xf32, #tpu.memory_space<vmem>>, vector<5x256xf32>
    %c-1_i32_52 = arith.constant -1 : i32
    %100 = vector.broadcast %c-1_i32_52 : i32 to vector<5x256xi32>
    %101 = arith.addi %20, %100 : vector<5x256xi32>
    %c0_i32_53 = arith.constant 0 : i32
    %102 = vector.broadcast %c0_i32_53 : i32 to vector<5x256xi32>
    %103 = arith.cmpi sge, %101, %102 : vector<5x256xi32>
    %c-1_i32_54 = arith.constant -1 : i32
    %104 = vector.broadcast %c-1_i32_54 : i32 to vector<5x256xi32>
    %105 = arith.addi %20, %104 : vector<5x256xi32>
    %c16_i32_55 = arith.constant 16 : i32
    %106 = vector.broadcast %c16_i32_55 : i32 to vector<5x256xi32>
    %107 = arith.cmpi slt, %105, %106 : vector<5x256xi32>
    %108 = arith.andi %103, %107 : vector<5x256xi1>
    %cst_56 = arith.constant 0.000000e+00 : f32
    %109 = vector.broadcast %cst_56 : f32 to vector<5x256xf32>
    %110 = arith.select %108, %99, %109 : vector<5x256xi1>, vector<5x256xf32>
    %c30 = arith.constant 30 : index
    %c0_57 = arith.constant 0 : index
    %111 = vector.load %arg7[%c30, %c0_57] : memref<45x256xf32, #tpu.memory_space<vmem>>, vector<5x256xf32>
    tpu.vector_store %arg7[%c30, %c0_57], %110 {strides = array<i32>} : memref<45x256xf32, #tpu.memory_space<vmem>>, vector<5x256xf32>,
    %c0_58 = arith.constant 0 : index
    %c33 = arith.constant 33 : index
    %112 = vector.load %arg6[%c0_58, %c33] : memref<5x290xf32, #tpu.memory_space<vmem>>, vector<5x256xf32>
    %c0_i32_59 = arith.constant 0 : i32
    %113 = vector.broadcast %c0_i32_59 : i32 to vector<5x256xi32>
    %114 = arith.addi %20, %113 : vector<5x256xi32>
    %c0_i32_60 = arith.constant 0 : i32
    %115 = vector.broadcast %c0_i32_60 : i32 to vector<5x256xi32>
    %116 = arith.cmpi sge, %114, %115 : vector<5x256xi32>
    %c0_i32_61 = arith.constant 0 : i32
    %117 = vector.broadcast %c0_i32_61 : i32 to vector<5x256xi32>
    %118 = arith.addi %20, %117 : vector<5x256xi32>
    %c16_i32_62 = arith.constant 16 : i32
    %119 = vector.broadcast %c16_i32_62 : i32 to vector<5x256xi32>
    %120 = arith.cmpi slt, %118, %119 : vector<5x256xi32>
    %121 = arith.andi %116, %120 : vector<5x256xi1>
    %cst_63 = arith.constant 0.000000e+00 : f32
    %122 = vector.broadcast %cst_63 : f32 to vector<5x256xf32>
    %123 = arith.select %121, %112, %122 : vector<5x256xi1>, vector<5x256xf32>
    %c35 = arith.constant 35 : index
    %c0_64 = arith.constant 0 : index
    %124 = vector.load %arg7[%c35, %c0_64] : memref<45x256xf32, #tpu.memory_space<vmem>>, vector<5x256xf32>
    tpu.vector_store %arg7[%c35, %c0_64], %123 {strides = array<i32>} : memref<45x256xf32, #tpu.memory_space<vmem>>, vector<5x256xf32>,
    %c0_65 = arith.constant 0 : index
    %c34 = arith.constant 34 : index
    %125 = vector.load %arg6[%c0_65, %c34] : memref<5x290xf32, #tpu.memory_space<vmem>>, vector<5x256xf32>
    %c1_i32_66 = arith.constant 1 : i32
    %126 = vector.broadcast %c1_i32_66 : i32 to vector<5x256xi32>
    %127 = arith.addi %20, %126 : vector<5x256xi32>
    %c0_i32_67 = arith.constant 0 : i32
    %128 = vector.broadcast %c0_i32_67 : i32 to vector<5x256xi32>
    %129 = arith.cmpi sge, %127, %128 : vector<5x256xi32>
    %c1_i32_68 = arith.constant 1 : i32
    %130 = vector.broadcast %c1_i32_68 : i32 to vector<5x256xi32>
    %131 = arith.addi %20, %130 : vector<5x256xi32>
    %c16_i32_69 = arith.constant 16 : i32
    %132 = vector.broadcast %c16_i32_69 : i32 to vector<5x256xi32>
    %133 = arith.cmpi slt, %131, %132 : vector<5x256xi32>
    %134 = arith.andi %129, %133 : vector<5x256xi1>
    %cst_70 = arith.constant 0.000000e+00 : f32
    %135 = vector.broadcast %cst_70 : f32 to vector<5x256xf32>
    %136 = arith.select %134, %125, %135 : vector<5x256xi1>, vector<5x256xf32>
    %c40 = arith.constant 40 : index
    %c0_71 = arith.constant 0 : index
    %137 = vector.load %arg7[%c40, %c0_71] : memref<45x256xf32, #tpu.memory_space<vmem>>, vector<5x256xf32>
    tpu.vector_store %arg7[%c40, %c0_71], %136 {strides = array<i32>} : memref<45x256xf32, #tpu.memory_space<vmem>>, vector<5x256xf32>,
    %c0_72 = arith.constant 0 : index
    %c0_73 = arith.constant 0 : index
    %138 = vector.load %arg1[%c0_72, %c0_73] : memref<10x45xf32, #tpu.memory_space<vmem>>, vector<10x45xf32>
    %c0_74 = arith.constant 0 : index
    %c0_75 = arith.constant 0 : index
    %139 = vector.load %arg7[%c0_74, %c0_75] : memref<45x256xf32, #tpu.memory_space<vmem>>, vector<45x256xf32>
    %cst_76 = arith.constant dense<0.000000e+00> : vector<10x256xf32>
    %140 = tpu.matmul %138, %139, %cst_76 {dimension_numbers = #tpu.dot_dimension_numbers<[1], [0], [0], [1], [0, 0, 1, 1], [], []>} : vector<10x45xf32>, vector<45x256xf32>, vector<10x256xf32> -> vector<10x256xf32>
    %c0_77 = arith.constant 0 : index
    %c0_78 = arith.constant 0 : index
    %141 = vector.load %arg2[%c0_77, %c0_78] : memref<10x1xf32, #tpu.memory_space<vmem>>, vector<10x1xf32>
    %142 = vector.broadcast %141 : vector<10x1xf32> to vector<10x256xf32>
    %143 = arith.addf %140, %142 : vector<10x256xf32>
    %144 = vector.extract_strided_slice %143 {offsets = [0, 0], sizes = [5, 256], strides = [1, 1]} : vector<10x256xf32> to vector<5x256xf32>
    %145 = vector.extract_strided_slice %143 {offsets = [5, 0], sizes = [5, 256], strides = [1, 1]} : vector<10x256xf32> to vector<5x256xf32>
    %c0_79 = arith.constant 0 : index
    %146 = memref.load %arg4[%c0_79] : memref<1xf32, #tpu.memory_space<smem>>
    %147 = vector.broadcast %146 : f32 to vector<5x256xf32>
    %148 = arith.addf %144, %147 : vector<5x256xf32>
    %149 = arith.addf %148, %145 : vector<5x256xf32>
    %c0_80 = arith.constant 0 : index
    %c0_81 = arith.constant 0 : index
    %c0_82 = arith.constant 0 : index
    %150 = vector.load %arg5[%c0_80, %c0_81, %c0_82] : memref<2x5x256xf32, #tpu.memory_space<vmem>>, vector<1x5x256xf32>
    %151 = vector.shape_cast %150 : vector<1x5x256xf32> to vector<5x256xf32>
    %152 = vector.shape_cast %149 : vector<5x256xf32> to vector<1x5x256xf32>
    tpu.vector_store %arg5[%c0_80, %c0_81, %c0_82], %152 {strides = array<i32>} : memref<2x5x256xf32, #tpu.memory_space<vmem>>, vector<1x5x256xf32>,
    %c0_83 = arith.constant 0 : index
    %c0_84 = arith.constant 0 : index
    %153 = vector.load %arg3[%c0_83, %c0_84] : memref<5x256xf32, #tpu.memory_space<vmem>>, vector<5x256xf32>
    %154 = arith.addf %153, %145 : vector<5x256xf32>
    %c1_85 = arith.constant 1 : index
    %c0_86 = arith.constant 0 : index
    %c0_87 = arith.constant 0 : index
    %155 = vector.load %arg5[%c1_85, %c0_86, %c0_87] : memref<2x5x256xf32, #tpu.memory_space<vmem>>, vector<1x5x256xf32>
    %156 = vector.shape_cast %155 : vector<1x5x256xf32> to vector<5x256xf32>
    %157 = vector.shape_cast %154 : vector<5x256xf32> to vector<1x5x256xf32>
    tpu.vector_store %arg5[%c1_85, %c0_86, %c0_87], %157 {strides = array<i32>} : memref<2x5x256xf32, #tpu.memory_space<vmem>>, vector<1x5x256xf32>,
    return
  }
}

</mosaic_0001>

<llo_original>
// kernel: fused_forward.1
$region0: #{fused_forward.1}
  #allocation0 [shape = 'u32[]', space=smem, size = 0x4, offset = 0x4, fixed_abs, tag = 'smem constant byte address 0x4 - core index']
  #allocation1 [shape = 'u32[144,128]{1,0:T(1,128)}', space=vmem, size = 0x12000, scoped, tag = 'internal scratch']
  #allocation2 [shape = 'f32[5,290]{1,0:T(8,128)}', space=vmem, size = 0x3000, scoped, tag = 'scratch operand']
  #allocation3 [shape = 'f32[45,256]{1,0:T(8,128)}', space=vmem, size = 0xc000, scoped, tag = 'scratch operand']
  #allocation4 [shape = 'f32[1]{0:T(128)S(6)}', space=smem, size = 0x200, scoped, tag = 'scoped memory for fused_forward.1']
  %s0 = inlined_call_operand.vmem [shape: f32[5,256], index: 0, kind: input, shape index: {}]
  %s1 = inlined_call_operand.vmem [shape: f32[10,45], index: 1, kind: input, shape index: {}]
  %s2 = inlined_call_operand.vmem [shape: f32[10,1], index: 2, kind: input, shape index: {}]
  %s3 = inlined_call_operand.vmem [shape: f32[5,256], index: 3, kind: input, shape index: {}]
  %s4 = inlined_call_operand.<no memory space> [shape: f32[1], index: 4, kind: input, shape index: {}]
  %s5 = inlined_call_operand.vmem [shape: f32[2,5,256], index: 5, kind: output, shape index: {}]
  %s6 = sld [smem:[#allocation0]]
  $region30: #{fused_forward.1} parent=0
    _
  %s8 = ssub.s32 1, %s6
  %s9 = scalar_select 0, %s8, %s6
  %10 = sst [smem:[#allocation4]] %s4
  // Predicated region
  $region2: #{fused_forward.1} parent=0 // pred_check
    _
  $region3: #{fused_forward.1} parent=0 // pred_check_branch
    %12 = sbr.rel (0) target = $region5
  $region4: #{fused_forward.1} parent=0 // pred_region
    _
  $region5: #{fused_forward.1} parent=0 // pred_fallthru
    _
  // Predicated region
  $region6: #{fused_forward.1} parent=0 // pred_check
    _
  $region7: #{fused_forward.1} parent=0 // pred_check_branch
    %14 = sbr.rel (0) target = $region9
  $region8: #{fused_forward.1} parent=0 // pred_region
    _
  $region9: #{fused_forward.1} parent=0 // pred_fallthru
    _
  // Predicated region
  $region10: #{fused_forward.1} parent=0 // pred_check
    _
  $region11: #{fused_forward.1} parent=0 // pred_check_branch
    %16 = sbr.rel (0) target = $region13
  $region12: #{fused_forward.1} parent=0 // pred_region
    _
  $region13: #{fused_forward.1} parent=0 // pred_fallthru
    _
  // Predicated region
  $region14: #{fused_forward.1} parent=0 // pred_check
    _
  $region15: #{fused_forward.1} parent=0 // pred_check_branch
    %18 = sbr.rel (0) target = $region17
  $region16: #{fused_forward.1} parent=0 // pred_region
    _
  $region17: #{fused_forward.1} parent=0 // pred_fallthru
    _
  // Predicated region
  $region18: #{fused_forward.1} parent=0 // pred_check
    _
  $region19: #{fused_forward.1} parent=0 // pred_check_branch
    %20 = sbr.rel (0) target = $region21
  $region20: #{fused_forward.1} parent=0 // pred_region
    _
  $region21: #{fused_forward.1} parent=0 // pred_fallthru
    _
  %21 = vst [vmem:[#allocation2] sm:$0x1f] 0.0
  %22 = vst [vmem:[#allocation2 + $0x8] sm:$0x1f] 0.0
  %vm23 = vcmask 274432
  %24 = vst.msk [vmem:[#allocation2 + $0x10] sm:$0x1f] %vm23, 0.0
  %v25 = vld [vmem:[%s0] sm:$0x1f]
  %v26 = vld [vmem:[%s0 + $0x8] sm:$0x1f]
  %29 = vrot.lane.b32.xlu0 %v25, 17
  %v30 = vpop.permute.xlu0 %29
  %31 = vrot.lane.b32.xlu0 %v26, 17
  %v32 = vpop.permute.xlu0 %31
  %vm33 = vcmask 138240
  %v34 = vsel %vm33, %v30, %v32
  %vm38 = vcmask 1044616
  %39 = vst.msk [vmem:[#allocation2] sm:$0x1f] %vm38, %v30
  %40 = vst [vmem:[#allocation2 + $0x8] sm:$0x1f] %v34
  %vm41 = vcmask 135168
  %42 = vst.msk [vmem:[#allocation2 + $0x10] sm:$0x1f] %vm41, %v32
  %v43 = vlaneseq
  %v44 = vand.u32 %v43, 127
  %v45 = vadd.s32 %v44, 128
  %vm46 = vcmp.lt.s32.totalorder %v44, 0
  %v47 = vsub.s32 0, %v44
  %v48 = vsel %vm46, %v47, %v44
  %v49 = vshrl.u32 %v48, 4
  %v50 = vand.u32 %v48, 15
  %v51 = vsub.s32 0, %v50
  %v52 = vsel %vm46, %v51, %v50
  %vm53 = vcmp.lt.s32.totalorder %v45, 0
  %v54 = vsub.s32 0, %v45
  %v55 = vsel %vm53, %v54, %v45
  %v56 = vshrl.u32 %v55, 4
  %v57 = vand.u32 %v55, 15
  %v58 = vsub.s32 0, %v57
  %v59 = vsel %vm53, %v58, %v57
  %vm60 = vcmp.ne.s32.totalorder %v52, 0
  %vm61 = vcmp.ne.s32.totalorder %v59, 0
  %vm62 = vcmp.lt.s32.totalorder %v52, 0
  %vm63 = vcmp.lt.s32.totalorder %v59, 0
  %vm64 = vmand %vm62, %vm60
  %vm65 = vmand %vm63, %vm61
  %v66 = vadd.s32 %v52, 16
  %v67 = vadd.s32 %v59, 16
  %v68 = vsel %vm64, %v66, %v52
  %v69 = vsel %vm65, %v67, %v59
  %v70 = vld [vmem:[#allocation2] sm:$0x1f]
  %v71 = vld [vmem:[#allocation2 + $0x8] sm:$0x1f]
  %v72 = vadd.s32 %v68, 4294967295
  %v73 = vadd.s32 %v69, 4294967295
  %vm74 = vcmp.ge.s32.totalorder %v72, 0
  %vm75 = vcmp.ge.s32.totalorder %v73, 0
  %vm76 = vcmp.lt.s32.totalorder %v72, 16
  %vm77 = vcmp.lt.s32.totalorder %v73, 16
  %vm78 = vmand %vm74, %vm76
  %vm79 = vmand %vm75, %vm77
  %v80 = vsel %vm78, %v70, 0.0
  %v81 = vsel %vm79, %v71, 0.0
  %82 = vst [vmem:[#allocation3] sm:$0x1f] %v80
  %83 = vst [vmem:[#allocation3 + $0x8] sm:$0x1f] %v81
  %v84 = vld [vmem:[#allocation2] sm:$0x1f]
  %v85 = vld [vmem:[#allocation2 + $0x8] sm:$0x1f]
  %v86 = vld [vmem:[#allocation2 + $0x10] sm:$0x1f]
  %vm87 = vcmp.ge.s32.totalorder %v68, 0
  %vm88 = vcmp.ge.s32.totalorder %v69, 0
  %vm89 = vcmp.lt.s32.totalorder %v68, 16
  %vm90 = vcmp.lt.s32.totalorder %v69, 16
  %vm91 = vmand %vm87, %vm89
  %vm92 = vmand %vm88, %vm90
  %96 = vrot.lane.b32.xlu0 %v84, 127
  %v97 = vpop.permute.xlu0 %96
  %98 = vrot.lane.b32.xlu0 %v85, 127
  %v99 = vpop.permute.xlu0 %98
  %100 = vrot.lane.b32.xlu0 %v86, 127
  %v101 = vpop.permute.xlu0 %100
  %vm102 = vcmask 1039360
  %v103 = vsel %vm102, %v97, %v99
  %v104 = vsel %vm102, %v99, %v101
  %v107 = vsel %vm91, %v103, 0.0
  %v108 = vsel %vm92, %v104, 0.0
  %v111 = vrot.slane %v107, 3
  %v112 = vrot.slane %v108, 3
  %115 = vst [vmem:[#allocation3] sm:$0xe0] %v111
  %116 = vst [vmem:[#allocation3 + $0x8] sm:$0xe0] %v112
  %117 = vst [vmem:[#allocation3 + $0x10] sm:$0x3] %v111
  %118 = vst [vmem:[#allocation3 + $0x18] sm:$0x3] %v112
  %v119 = vld [vmem:[#allocation2] sm:$0x1f]
  %v120 = vld [vmem:[#allocation2 + $0x8] sm:$0x1f]
  %v121 = vld [vmem:[#allocation2 + $0x10] sm:$0x1f]
  %v122 = vadd.s32 %v68, 1
  %v123 = vadd.s32 %v69, 1
  %vm124 = vcmp.ge.s32.totalorder %v122, 0
  %vm125 = vcmp.ge.s32.totalorder %v123, 0
  %vm126 = vcmp.lt.s32.totalorder %v122, 16
  %vm127 = vcmp.lt.s32.totalorder %v123, 16
  %vm128 = vmand %vm124, %vm126
  %vm129 = vmand %vm125, %vm127
  %133 = vrot.lane.b32.xlu0 %v119, 126
  %v134 = vpop.permute.xlu0 %133
  %135 = vrot.lane.b32.xlu0 %v120, 126
  %v136 = vpop.permute.xlu0 %135
  %137 = vrot.lane.b32.xlu0 %v121, 126
  %v138 = vpop.permute.xlu0 %137
  %vm139 = vcmask 1031168
  %v140 = vsel %vm139, %v134, %v136
  %v141 = vsel %vm139, %v136, %v138
  %v144 = vsel %vm128, %v140, 0.0
  %v145 = vsel %vm129, %v141, 0.0
  %v148 = vrot.slane %v144, 6
  %v149 = vrot.slane %v145, 6
  %152 = vst [vmem:[#allocation3 + $0x10] sm:$0x7c] %v148
  %153 = vst [vmem:[#allocation3 + $0x18] sm:$0x7c] %v149
  %v154 = vld [vmem:[#allocation2] sm:$0x1f]
  %v155 = vld [vmem:[#allocation2 + $0x8] sm:$0x1f]
  %v156 = vld [vmem:[#allocation2 + $0x10] sm:$0x1f]
  %160 = vrot.lane.b32.xlu0 %v154, 112
  %v161 = vpop.permute.xlu0 %160
  %162 = vrot.lane.b32.xlu0 %v155, 112
  %v163 = vpop.permute.xlu0 %162
  %164 = vrot.lane.b32.xlu0 %v156, 112
  %v165 = vpop.permute.xlu0 %164
  %vm166 = vcmask 916480
  %v167 = vsel %vm166, %v161, %v163
  %v168 = vsel %vm166, %v163, %v165
  %v171 = vsel %vm78, %v167, 0.0
  %v172 = vsel %vm79, %v168, 0.0
  %v175 = vrot.slane %v171, 1
  %v176 = vrot.slane %v172, 1
  %179 = vst [vmem:[#allocation3 + $0x10] sm:$0x80] %v175
  %180 = vst [vmem:[#allocation3 + $0x18] sm:$0x80] %v176
  %181 = vst [vmem:[#allocation3 + $0x20] sm:$0xf] %v175
  %182 = vst [vmem:[#allocation3 + $0x28] sm:$0xf] %v176
  %v183 = vld [vmem:[#allocation2] sm:$0x1f]
  %v184 = vld [vmem:[#allocation2 + $0x8] sm:$0x1f]
  %v185 = vld [vmem:[#allocation2 + $0x10] sm:$0x1f]
  %189 = vrot.lane.b32.xlu0 %v183, 111
  %v190 = vpop.permute.xlu0 %189
  %191 = vrot.lane.b32.xlu0 %v184, 111
  %v192 = vpop.permute.xlu0 %191
  %193 = vrot.lane.b32.xlu0 %v185, 111
  %v194 = vpop.permute.xlu0 %193
  %vm195 = vcmask 908288
  %v196 = vsel %vm195, %v190, %v192
  %v197 = vsel %vm195, %v192, %v194
  %v200 = vsel %vm91, %v196, 0.0
  %v201 = vsel %vm92, %v197, 0.0
  %v204 = vrot.slane %v200, 4
  %v205 = vrot.slane %v201, 4
  %208 = vst [vmem:[#allocation3 + $0x20] sm:$0xf0] %v204
  %209 = vst [vmem:[#allocation3 + $0x28] sm:$0xf0] %v205
  %210 = vst [vmem:[#allocation3 + $0x30] sm:$0x1] %v204
  %211 = vst [vmem:[#allocation3 + $0x38] sm:$0x1] %v205
  %v212 = vld [vmem:[#allocation2] sm:$0x1f]
  %v213 = vld [vmem:[#allocation2 + $0x8] sm:$0x1f]
  %v214 = vld [vmem:[#allocation2 + $0x10] sm:$0x1f]
  %218 = vrot.lane.b32.xlu0 %v212, 110
  %v219 = vpop.permute.xlu0 %218
  %220 = vrot.lane.b32.xlu0 %v213, 110
  %v221 = vpop.permute.xlu0 %220
  %222 = vrot.lane.b32.xlu0 %v214, 110
  %v223 = vpop.permute.xlu0 %222
  %vm224 = vcmask 900096
  %v225 = vsel %vm224, %v219, %v221
  %v226 = vsel %vm224, %v221, %v223
  %v229 = vsel %vm128, %v225, 0.0
  %v230 = vsel %vm129, %v226, 0.0
  %v233 = vrot.slane %v229, 7
  %v234 = vrot.slane %v230, 7
  %237 = vst [vmem:[#allocation3 + $0x30] sm:$0x3e] %v233
  %238 = vst [vmem:[#allocation3 + $0x38] sm:$0x3e] %v234
  %v239 = vld [vmem:[#allocation2] sm:$0x1f]
  %v240 = vld [vmem:[#allocation2 + $0x8] sm:$0x1f]
  %v241 = vld [vmem:[#allocation2 + $0x10] sm:$0x1f]
  %245 = vrot.lane.b32.xlu0 %v239, 96
  %v246 = vpop.permute.xlu0 %245
  %247 = vrot.lane.b32.xlu0 %v240, 96
  %v248 = vpop.permute.xlu0 %247
  %249 = vrot.lane.b32.xlu0 %v241, 96
  %v250 = vpop.permute.xlu0 %249
  %vm251 = vcmask 785408
  %v252 = vsel %vm251, %v246, %v248
  %v253 = vsel %vm251, %v248, %v250
  %v256 = vsel %vm78, %v252, 0.0
  %v257 = vsel %vm79, %v253, 0.0
  %v260 = vrot.slane %v256, 2
  %v261 = vrot.slane %v257, 2
  %264 = vst [vmem:[#allocation3 + $0x30] sm:$0xc0] %v260
  %265 = vst [vmem:[#allocation3 + $0x38] sm:$0xc0] %v261
  %266 = vst [vmem:[#allocation3 + $0x40] sm:$0x7] %v260
  %267 = vst [vmem:[#allocation3 + $0x48] sm:$0x7] %v261
  %v268 = vld [vmem:[#allocation2] sm:$0x1f]
  %v269 = vld [vmem:[#allocation2 + $0x8] sm:$0x1f]
  %v270 = vld [vmem:[#allocation2 + $0x10] sm:$0x1f]
  %274 = vrot.lane.b32.xlu0 %v268, 95
  %v275 = vpop.permute.xlu0 %274
  %276 = vrot.lane.b32.xlu0 %v269, 95
  %v277 = vpop.permute.xlu0 %276
  %278 = vrot.lane.b32.xlu0 %v270, 95
  %v279 = vpop.permute.xlu0 %278
  %vm280 = vcmask 777216
  %v281 = vsel %vm280, %v275, %v277
  %v282 = vsel %vm280, %v277, %v279
  %v285 = vsel %vm91, %v281, 0.0
  %v286 = vsel %vm92, %v282, 0.0
  %v289 = vrot.slane %v285, 5
  %v290 = vrot.slane %v286, 5
  %293 = vst [vmem:[#allocation3 + $0x40] sm:$0xf8] %v289
  %294 = vst [vmem:[#allocation3 + $0x48] sm:$0xf8] %v290
  %v295 = vld [vmem:[#allocation2] sm:$0x1f]
  %v296 = vld [vmem:[#allocation2 + $0x8] sm:$0x1f]
  %v297 = vld [vmem:[#allocation2 + $0x10] sm:$0x1f]
  %301 = vrot.lane.b32.xlu0 %v295, 94
  %v302 = vpop.permute.xlu0 %301
  %303 = vrot.lane.b32.xlu0 %v296, 94
  %v304 = vpop.permute.xlu0 %303
  %305 = vrot.lane.b32.xlu0 %v297, 94
  %v306 = vpop.permute.xlu0 %305
  %vm307 = vcmask 769024
  %v308 = vsel %vm307, %v302, %v304
  %v309 = vsel %vm307, %v304, %v306
  %v312 = vsel %vm128, %v308, 0.0
  %v313 = vsel %vm129, %v309, 0.0
  %314 = vst [vmem:[#allocation3 + $0x50] sm:$0x1f] %v312
  %315 = vst [vmem:[#allocation3 + $0x58] sm:$0x1f] %v313
  %v316 = vld [vmem:[%s1] sm:$0xff]
  %v317 = vld [vmem:[%s1 + $0x8] sm:$0x3]
  %v318 = vld [vmem:[#allocation3] sm:$0xff]
  %v319 = vld [vmem:[#allocation3 + $0x8] sm:$0xff]
  %v320 = vld [vmem:[#allocation3 + $0x10] sm:$0xff]
  %v321 = vld [vmem:[#allocation3 + $0x18] sm:$0xff]
  %v322 = vld [vmem:[#allocation3 + $0x20] sm:$0xff]
  %v323 = vld [vmem:[#allocation3 + $0x28] sm:$0xff]
  %v324 = vld [vmem:[#allocation3 + $0x30] sm:$0xff]
  %v325 = vld [vmem:[#allocation3 + $0x38] sm:$0xff]
  %v326 = vld [vmem:[#allocation3 + $0x40] sm:$0xff]
  %v327 = vld [vmem:[#allocation3 + $0x48] sm:$0xff]
  %v328 = vld [vmem:[#allocation3 + $0x50] sm:$0x1f]
  %v329 = vld [vmem:[#allocation3 + $0x58] sm:$0x1f]
  %v330 = vld [vmem:[%s2] sm:$0xff]
  %v331 = vld [vmem:[%s2 + $0x8] sm:$0x3]
  %333 = vset.pattern.permute.xlu0 0
  %334 = vperm.xlu0 %333, %v330
  %v335 = vpop.permute.xlu0 %334
  %338 = vset.pattern.permute.xlu0 0
  %339 = vperm.xlu0 %338, %v331
  %v340 = vpop.permute.xlu0 %339
  %vm342 = vcmask 367616
  %v344 = vsel %vm342, %v316, 0
  %v347 = vsel %vm342, %v317, 0
  %vm349 = vcmask 1044480
  %v351 = vsel %vm349, %v328, 0
  %v354 = vsel %vm349, %v329, 0
  %356 = vmatprep.subr.mxu0 %v319
  %357 = vmatpush1.msra.mxu0 %v318
  %358 = vmatprep.subr.mxu0 %v321
  %359 = vmatpush1.msra.mxu0 %v320
  %360 = vmatprep.subr.mxu0 %v323
  %361 = vmatpush1.msra.mxu0 %v322
  %362 = vmatprep.subr.mxu0 %v325
  %363 = vmatpush1.msra.mxu0 %v324
  %364 = vmatprep.subr.mxu0 %v327
  %365 = vmatpush1.msra.mxu0 %v326
  %366 = vmatprep.subr.mxu0 %v354
  %367 = vmatpush1.msra.mxu0 %v351
  %368 = vmatprep.subr.mxu0 0.0
  %369 = vmatpush1.msra.mxu0 0.0
  %370 = vmatprep.subr.mxu0 0.0
  %371 = vmatpush1.msra.mxu0 0.0
  %372 = vmatprep.subr.mxu0 0.0
  %373 = vmatpush1.msra.mxu0 0.0
  %374 = vmatprep.subr.mxu0 0.0
  %375 = vmatpush1.msra.mxu0 0.0
  %376 = vmatprep.subr.mxu0 0.0
  %377 = vmatpush1.msra.mxu0 0.0
  %378 = vmatprep.subr.mxu0 0.0
  %379 = vmatpush1.msra.mxu0 0.0
  %380 = vmatprep.subr.mxu0 0.0
  %381 = vmatpush1.msra.mxu0 0.0
  %382 = vmatprep.subr.mxu0 0.0
  %383 = vmatpush1.msra.mxu0 0.0
  %384 = vmatprep.subr.mxu0 0.0
  %385 = vmatpush1.msra.mxu0 0.0
  %386 = vmatprep.subr.mxu0 0.0
  %387 = vmatpush1.msra.mxu0 0.0
  %388 = vmatprep.subr.mxu0 0.0
  %389 = vmatpush1.msra.mxu0 0.0
  %390 = vmatprep.subr.mxu0 0.0
  %391 = vmatpush1.msra.mxu0 0.0
  %392 = vmatprep.subr.mxu0 0.0
  %393 = vmatpush1.msra.mxu0 0.0
  %394 = vmatprep.subr.mxu0 0.0
  %395 = vmatpush1.msra.mxu0 0.0
  %396 = vmatprep.subr.mxu0 0.0
  %397 = vmatpush1.msra.mxu0 0.0
  %398 = vmatprep.subr.mxu0 0.0
  %399 = vmatpush1.msra.mxu0 0.0
  %400 = vmatprep.subr.mxu0 0.0
  %401 = vmatpush1.msra.mxu0 0.0
  %402 = vmatprep.subr.mxu0 0.0
  %403 = vmatpush1.msra.mxu0 0.0
  %404 = vmatprep.subr.mxu0 0.0
  %405 = vmatpush1.msra.mxu0 0.0
  %406 = vmatprep.subr.mxu0 0.0
  %407 = vmatpush1.msra.mxu0 0.0
  %408 = vmatprep.subr.mxu0 0.0
  %409 = vmatpush1.msra.mxu0 0.0
  %410 = vmatprep.subr.mxu0 0.0
  %411 = vmatpush1.msra.mxu0 0.0
  %412 = vmatprep.subr.mxu0 0.0
  %413 = vmatpush1.msra.mxu0 0.0
  %414 = vmatprep.subr.mxu0 0.0
  %415 = vmatpush1.msra.mxu0 0.0
  %416 = vmatprep.subr.mxu0 0.0
  %417 = vmatpush1.msra.mxu0 0.0
  %418 = vmatprep.subr.mxu0 0.0
  %419 = vmatpush1.msra.mxu0 0.0
  %420 = vmatprep.mubr.f32.mxu0 0.0
  %421 = vmatmul.mubr.f32.gmra.mrb[0].mxu0 %v344
  %v422 = vpop.f32.mrb[0].mxu0
  %v423 = vadd.f32 %v335, %v422
  %v424 = vpop.f32.mrb[0].mxu0
  %v425 = vadd.f32 %v335, %v424
  %426 = vmatprep.mubr.f32.mxu0 0.0
  %427 = vmatmul.mubr.f32.gmra.mrb[0].mxu0 %v347
  %v428 = vpop.f32.mrb[0].mxu0
  %v429 = vadd.f32 %v340, %v428
  %v430 = vpop.f32.mrb[0].mxu0
  %v431 = vadd.f32 %v340, %v430
  %432 = vdwg.mxu0
  %s433 = sld [smem:[#allocation4]]
  %v434 = vstv %s433
  %v435 = vadd.f32 %v423, %v434
  %v436 = vadd.f32 %v425, %v434
  %vm441 = vcmask 1042432
  %v442 = vrot.slane %v423, 5
  %v443 = vrot.slane %v429, 5
  %v444 = vsel %vm441, %v442, %v443
  %v445 = vrot.slane %v425, 5
  %v446 = vrot.slane %v431, 5
  %v447 = vsel %vm441, %v445, %v446
  %v450 = vadd.f32 %v435, %v444
  %v451 = vadd.f32 %v436, %v447
  %452 = vst [vmem:[%s5] sm:$0x1f] %v450
  %453 = vst [vmem:[%s5 + $0x8] sm:$0x1f] %v451
  %v454 = vld [vmem:[%s3] sm:$0x1f]
  %v455 = vld [vmem:[%s3 + $0x8] sm:$0x1f]
  %v456 = vadd.f32 %v454, %v444
  %v457 = vadd.f32 %v455, %v447
  %s458 = scalar_lea.vmem %s5, 16
  %459 = vst [vmem:[%s458] sm:$0x1f] %v456
  %460 = vst [vmem:[%s458 + $0x8] sm:$0x1f] %v457
  // Predicated region
  $region22: #{fused_forward.1} parent=0 // pred_check
    _
  $region23: #{fused_forward.1} parent=0 // pred_check_branch
    %462 = sbr.rel (0) target = $region25
  $region24: #{fused_forward.1} parent=0 // pred_region
    _
  $region25: #{fused_forward.1} parent=0 // pred_fallthru
    _
  // Predicated region
  $region26: #{fused_forward.1} parent=0 // pred_check
    _
  $region27: #{fused_forward.1} parent=0 // pred_check_branch
    %464 = sbr.rel (0) target = $region29
  $region28: #{fused_forward.1} parent=0 // pred_region
    _
  $region29: #{fused_forward.1} parent=0 // pred_fallthru
    _

</llo_original>
